<compile_context>
chip_gen: v5e
topology: v5e:2x2
jax: 0.10.0
libtpu: 0.0.40
codegen_flags: <defaults>
</compile_context>

<pallas_src>
import functools
import math

import jax
import jax.numpy as jnp
from jax.experimental import pallas as pl
from jax.experimental.pallas import tpu as pltpu


def _causal_conv1d_kernel(*refs, ksize, stride, dilation, tl, pad, halo_len,
                          has_halo, use_scratch, compute_dtype):
    # refs = ([halo_ref,] cur_ref, w_ref, b_ref, o_ref [, col_ref])
    i = 0
    halo_ref = None
    if has_halo:
        halo_ref = refs[0]
        i = 1
    cur_ref, w_ref, b_ref, o_ref = refs[i:i + 4]
    col_ref = refs[i + 4] if use_scratch else None

    c_in = cur_ref.shape[0]

    # Causal-halo prefix: the `pad` lanes immediately preceding this block.
    # Multi-tile: read from the (small) halo input, zeroed for the first tile.
    # Single-tile: the causal padding is a compile-time zeros constant.
    if pad > 0:
        if has_halo:
            halo_tail = halo_ref[...][:, halo_len - pad:]
            halo_tail = jnp.where(pl.program_id(1) == 0,
                                  jnp.zeros_like(halo_tail), halo_tail)
        else:
            halo_tail = jnp.zeros((c_in, pad), dtype=cur_ref.dtype)

    def tap(k):
        # Output lane u of this tile reads block-relative input lane
        # u*stride - need for tap k, where need = (K-1-k)*dilation  (<= pad).
        need = (ksize - 1 - k) * dilation
        if need == 0:
            if stride == 1:
                return cur_ref[:, pl.ds(0, tl)]
            span = (tl - 1) * stride + 1
            return cur_ref[:, pl.ds(0, span)][:, ::stride]
        n_h = -(-need // stride)                 # tap samples inside the halo
        h_start = pad - need
        if n_h >= tl:                            # whole tap in halo / zeros
            return halo_tail[:, h_start:h_start + (tl - 1) * stride + 1:stride]
        halo_part = halo_tail[:, h_start:h_start + (n_h - 1) * stride + 1:stride]
        c_start = n_h * stride - need
        c_cnt = tl - n_h
        if stride == 1:
            cur_part = cur_ref[:, pl.ds(c_start, c_cnt)]
        else:
            c_span = (c_cnt - 1) * stride + 1
            cur_part = cur_ref[:, pl.ds(c_start, c_span)][:, ::stride]
        return jnp.concatenate([halo_part, cur_part], axis=1)

    taps = [tap(k) for k in range(ksize)]

    # im2col operand (K*C_in, TL): kept in vregs when small, staged in a
    # compute-dtype VMEM scratch only when K*C_in is large.
    if use_scratch:
        for k in range(ksize):
            col_ref[k * c_in:(k + 1) * c_in, :] = taps[k].astype(col_ref.dtype)
        xcol = col_ref[...]
    else:
        xcol = taps[0] if ksize == 1 else jnp.concatenate(taps, axis=0)

    w = w_ref[...]
    if compute_dtype is not None:
        # bf16 MXU operands (single pass), f32 accumulate.
        acc = jnp.dot(w.astype(compute_dtype), xcol.astype(compute_dtype),
                      preferred_element_type=jnp.float32)
    else:
        # Bit-faithful to the f32 PyTorch module (slower: multi-pass MXU).
        acc = jnp.dot(w.astype(jnp.float32), xcol.astype(jnp.float32),
                      preferred_element_type=jnp.float32,
                      precision=jax.lax.Precision.HIGHEST)
    o_ref[...] = (acc + b_ref[...]).astype(o_ref.dtype)


def causal_conv1d(x, weight, bias, *, stride=1, dilation=1, lane_tile=None,
                  compute_dtype=None):
    """Causal Conv1d. x: (N, C_in, L); weight: (C_out, C_in, K); bias: (C_out,).

    compute_dtype=jnp.bfloat16 is the recommended fast path (f32 accumulate);
    the default (None) keeps f32 operands with HIGHEST precision.
    """
    n, c_in, length = x.shape
    c_out, c_in_w, ksize = weight.shape
    assert c_in == c_in_w
    assert stride >= 1 and dilation >= 1 and length >= 1
    pad = dilation * (ksize - 1)
    l_out = (length - 1) // stride + 1

    halo_len = 0 if pad == 0 else 128 * pl.cdiv(pad, 128)
    itemsize = jnp.dtype(x.dtype).itemsize
    col_dtype = (jnp.dtype(compute_dtype) if compute_dtype is not None
                 else jnp.dtype(x.dtype))

    # --- Chip-aware VMEM budget (v5e/v6e 128 MiB, v7x 64 MiB per TC).
    try:
        phys_vmem = int(pltpu.get_tpu_info().vmem_capacity_bytes)
    except Exception:
        phys_vmem = 64 << 20                       # conservative fallback
    budget = int(phys_vmem * 0.7)

    def _use_scratch(tl_):
        return (ksize * c_in > 64) or (ksize * c_in * tl_ * 4 > (256 << 10))

    def footprint(tl_, blk_, halo_):
        f = 2 * c_in * blk_ * itemsize                      # cur (dbl-buffered)
        f += 2 * c_in * halo_ * itemsize                    # halo (dbl-buffered)
        f += 2 * c_out * tl_ * itemsize                     # out (dbl-buffered)
        f += 2 * (c_out * ksize * c_in + c_out) * 4         # resident weight/bias
        if _use_scratch(tl_):
            f += ksize * c_in * tl_ * col_dtype.itemsize    # im2col scratch
        f += (ksize * c_in + c_out) * tl_ * 4               # vreg/spill temporaries
        return f

    # --- Output lane tile: largest 128-multiple that fits the VMEM budget.
    # Multi-tiling (plus the batch grid axis) also keeps both v7x TensorCores
    # busy instead of one mega tile.
    if lane_tile is not None:
        tl = min(int(lane_tile), l_out)
    else:
        tl = l_out
        for cand in (2048, 1024, 512, 256, 128):
            if cand >= l_out:
                continue
            blk = cand * stride
            if halo_len and (blk < halo_len or blk % halo_len != 0):
                continue
            if footprint(cand, blk, halo_len) > budget:
                continue
            tl = cand
            break
    n_l = pl.cdiv(l_out, tl)

    if n_l > 1:
        blk = tl * stride
        if (tl % 128 != 0) or (halo_len and (blk < halo_len or blk % halo_len != 0)):
            # TODO(synk): a multi-block halo chain would keep tiling for very
            # large dilation*(K-1); rare, so fall back to one full-length tile.
            tl, n_l = l_out, 1

    blk_in = length if n_l == 1 else tl * stride
    has_halo = (pad > 0) and (n_l > 1)
    use_scratch = _use_scratch(tl)
    ratio = (blk_in // halo_len) if has_halo else 1

    # VMEM limit: never below the estimated requirement; generous on v5e/v6e.
    est = footprint(tl, blk_in, halo_len if has_halo else 0)
    vmem_limit = max(2 * est, 32 << 20)
    vmem_limit = min(vmem_limit, phys_vmem - (2 << 20))
    vmem_limit = max(vmem_limit, min(est + (8 << 20), phys_vmem - (2 << 20)))
    vmem_limit = int(vmem_limit)

    # im2col weight layout: w2d[o, k*C_in + c] = weight[o, c, k]  (tiny, host-side).
    w2d = jnp.transpose(weight, (0, 2, 1)).reshape(c_out, ksize * c_in)
    if compute_dtype is not None:
        w2d = w2d.astype(compute_dtype)
    bias2d = bias.astype(jnp.float32).reshape(c_out, 1)

    kernel = functools.partial(
        _causal_conv1d_kernel, ksize=ksize, stride=stride, dilation=dilation,
        tl=tl, pad=pad, halo_len=halo_len, has_halo=has_halo,
        use_scratch=use_scratch, compute_dtype=compute_dtype)

    in_specs = []
    args = []
    if has_halo:
        # Left halo: the lanes immediately preceding the current block (same
        # array `x`, different window). Zeroed in-kernel for j == 0, so no
        # HBM-side causal padding pass is ever materialized.
        in_specs.append(
            pl.BlockSpec((None, c_in, halo_len),
                         lambda b, j: (b, 0, jnp.maximum(j * ratio - 1, 0))))
        args.append(x)
    in_specs += [
        # Current input block.
        # TODO(synk): sweep pipeline_mode=pl.Buffered(3) here for tiny tiles.
        pl.BlockSpec((None, c_in, blk_in), lambda b, j: (b, 0, j)),
        # im2col-reshaped weight + bias, resident across the whole grid.
        pl.BlockSpec((c_out, ksize * c_in), lambda b, j: (0, 0)),
        pl.BlockSpec((c_out, 1), lambda b, j: (0, 0)),
    ]
    args += [x, w2d, bias2d]

    scratch_shapes = []
    if use_scratch:
        scratch_shapes.append(pltpu.VMEM((ksize * c_in, tl), col_dtype))

    return pl.pallas_call(
        kernel,
        out_shape=jax.ShapeDtypeStruct((n, c_out, l_out), x.dtype),
        grid_spec=pltpu.PrefetchScalarGridSpec(
            num_scalar_prefetch=0,
            grid=(n, n_l),
            in_specs=in_specs,
            out_specs=pl.BlockSpec((None, c_out, tl), lambda b, j: (b, 0, j)),
            scratch_shapes=scratch_shapes,
        ),
        compiler_params=pltpu.CompilerParams(
            dimension_semantics=("parallel", "parallel"),
            vmem_limit_bytes=vmem_limit),
    )(*args)


def _reference(x, weight, bias, *, stride, dilation):
    """Pure-JAX reference of CausalConv1d.forward."""
    k = weight.shape[-1]
    pad = dilation * (k - 1)
    x_pad = jnp.pad(x, ((0, 0), (0, 0), (pad, 0)))
    out = jax.lax.conv_general_dilated(
        x_pad, weight,
        window_strides=(stride,),
        padding="VALID",
        rhs_dilation=(dilation,),
        dimension_numbers=("NCH", "OIH", "NCH"),
        precision=jax.lax.Precision.HIGHEST)
    return out + bias[None, :, None]


def _check(out, ref, atol, rtol, name):
    assert out.shape == ref.shape, (name, out.shape, ref.shape)
    err = float(jnp.max(jnp.abs(out - ref)))
    assert jnp.allclose(out, ref, atol=atol, rtol=rtol), (name, err)


if __name__ == "__main__":
    key = jax.random.PRNGKey(0)
    kx, kw, kb, kx2, kx3, kw2, kb2, kx4 = jax.random.split(key, 8)

    # --- Case 1: module's small config (single tile, no HBM halo read).
    batch, c_in, c_out, ks, dil, length = 2, 4, 6, 3, 2, 16
    bound = 1.0 / math.sqrt(c_in * ks)   # nn.Conv1d default init bound
    w = jax.random.uniform(kw, (c_out, c_in, ks), minval=-bound, maxval=bound,
                           dtype=jnp.float32)
    b = jax.random.uniform(kb, (c_out,), minval=-bound, maxval=bound,
                           dtype=jnp.float32)
    x = jax.random.normal(kx, (batch, c_in, length), dtype=jnp.float32)
    out = jax.block_until_ready(causal_conv1d(x, w, b, stride=1, dilation=dil))
    _check(out, _reference(x, w, b, stride=1, dilation=dil), 1e-4, 1e-4, "case1")

    # --- Case 2: multi-tile + in-kernel causal halo (two 128-lane tiles).
    x2 = jax.random.normal(kx2, (batch, c_in, 256), dtype=jnp.float32)
    out2 = jax.block_until_ready(
        causal_conv1d(x2, w, b, stride=1, dilation=dil, lane_tile=128))
    _check(out2, _reference(x2, w, b, stride=1, dilation=dil), 1e-4, 1e-4, "case2")

    # --- Case 3: non-multiple-of-128 length -> masked tail tile.
    x3 = jax.random.normal(kx3, (batch, c_in, 300), dtype=jnp.float32)
    out3 = jax.block_until_ready(
        causal_conv1d(x3, w, b, stride=1, dilation=dil, lane_tile=128))
    _check(out3, _reference(x3, w, b, stride=1, dilation=dil), 1e-4, 1e-4, "case3")

    # --- Case 4: larger channels -> im2col VMEM scratch path; also bf16 operands.
    c_in4, c_out4, ks4 = 48, 64, 3
    bound4 = 1.0 / math.sqrt(c_in4 * ks4)
    w4 = jax.random.uniform(kw2, (c_out4, c_in4, ks4), minval=-bound4,
                            maxval=bound4, dtype=jnp.float32)
    b4 = jax.random.uniform(kb2, (c_out4,), minval=-bound4, maxval=bound4,
                            dtype=jnp.float32)
    x4 = jax.random.normal(kx4, (batch, c_in4, 256), dtype=jnp.float32)
    out4 = jax.block_until_ready(
        causal_conv1d(x4, w4, b4, stride=1, dilation=1, lane_tile=128))
    _check(out4, _reference(x4, w4, b4, stride=1, dilation=1), 1e-4, 1e-4,
           "case4_f32")
    out4b = jax.block_until_ready(
        causal_conv1d(x4, w4, b4, stride=1, dilation=1, lane_tile=128,
                      compute_dtype=jnp.bfloat16))
    _check(out4b, _reference(x4, w4, b4, stride=1, dilation=1), 5e-2, 5e-2,
           "case4_bf16")

    print("KERNEL_OK")
</pallas_src>

<mosaic_0001>
module attributes {stable_mosaic.version = 11 : i64} {
  func.func @_causal_conv1d_kernel(%arg0: i32, %arg1: i32, %arg2: memref<1x4x16xf32, #tpu.memory_space<vmem>>, %arg3: memref<6x12xf32, #tpu.memory_space<vmem>>, %arg4: memref<6x1xf32, #tpu.memory_space<vmem>>, %arg5: memref<1x6x16xf32, #tpu.memory_space<vmem>>) attributes {dimension_semantics = [#tpu.dimension_semantics<parallel>, #tpu.dimension_semantics<parallel>], iteration_bounds = array<i64: 2, 1>, scalar_prefetch = 0 : i64, scratch_operands = 0 : i64, tpu.core_type = #tpu.core_type<tc>, window_params = [{transform_indices = @transform_0, window_bounds = array<i64: 1, 4, 16>}, {pipeline_mode = #tpu.pipeline_mode<synchronous>, transform_indices = @transform_1, window_bounds = array<i64: 6, 12>}, {pipeline_mode = #tpu.pipeline_mode<synchronous>, transform_indices = @transform_2, window_bounds = array<i64: 6, 1>}, {transform_indices = @transform_3, window_bounds = array<i64: 1, 6, 16>}]} {
    %cst = arith.constant 0.000000e+00 : f32
    %0 = vector.broadcast %cst : f32 to vector<4x4xf32>
    %c0 = arith.constant 0 : index
    %c0_0 = arith.constant 0 : index
    %c0_1 = arith.constant 0 : index
    %1 = vector.load %arg2[%c0, %c0_0, %c0_1] : memref<1x4x16xf32, #tpu.memory_space<vmem>>, vector<1x4x12xf32>
    %2 = vector.shape_cast %1 : vector<1x4x12xf32> to vector<4x12xf32>
    %3 = tpu.concatenate %0, %2 in 1 : vector<4x4xf32>, vector<4x12xf32> -> vector<4x16xf32>
    %4 = vector.extract_strided_slice %0 {offsets = [0, 2], sizes = [4, 2], strides = [1, 1]} : vector<4x4xf32> to vector<4x2xf32>
    %c0_2 = arith.constant 0 : index
    %c0_3 = arith.constant 0 : index
    %c0_4 = arith.constant 0 : index
    %5 = vector.load %arg2[%c0_2, %c0_3, %c0_4] : memref<1x4x16xf32, #tpu.memory_space<vmem>>, vector<1x4x14xf32>
    %6 = vector.shape_cast %5 : vector<1x4x14xf32> to vector<4x14xf32>
    %7 = tpu.concatenate %4, %6 in 1 : vector<4x2xf32>, vector<4x14xf32> -> vector<4x16xf32>
    %c0_5 = arith.constant 0 : index
    %c0_6 = arith.constant 0 : index
    %c0_7 = arith.constant 0 : index
    %8 = vector.load %arg2[%c0_5, %c0_6, %c0_7] : memref<1x4x16xf32, #tpu.memory_space<vmem>>, vector<1x4x16xf32>
    %9 = vector.shape_cast %8 : vector<1x4x16xf32> to vector<4x16xf32>
    %10 = tpu.concatenate %3, %7, %9 in 0 : vector<4x16xf32>, vector<4x16xf32>, vector<4x16xf32> -> vector<12x16xf32>
    %c0_8 = arith.constant 0 : index
    %c0_9 = arith.constant 0 : index
    %11 = vector.load %arg3[%c0_8, %c0_9] : memref<6x12xf32, #tpu.memory_space<vmem>>, vector<6x12xf32>
    %cst_10 = arith.constant dense<0.000000e+00> : vector<6x16xf32>
    %12 = tpu.matmul %11, %10, %cst_10 {dimension_numbers = #tpu.dot_dimension_numbers<[1], [0], [0], [1], [0, 0, 1, 1], [], []>, precision = #tpu.contract_precision<fp32>} : vector<6x12xf32>, vector<12x16xf32>, vector<6x16xf32> -> vector<6x16xf32>
    %c0_11 = arith.constant 0 : index
    %c0_12 = arith.constant 0 : index
    %13 = vector.load %arg4[%c0_11, %c0_12] : memref<6x1xf32, #tpu.memory_space<vmem>>, vector<6x1xf32>
    %14 = vector.broadcast %13 : vector<6x1xf32> to vector<6x16xf32>
    %15 = arith.addf %12, %14 : vector<6x16xf32>
    %c0_13 = arith.constant 0 : index
    %c0_14 = arith.constant 0 : index
    %c0_15 = arith.constant 0 : index
    %16 = vector.load %arg5[%c0_13, %c0_14, %c0_15] : memref<1x6x16xf32, #tpu.memory_space<vmem>>, vector<1x6x16xf32>
    %17 = vector.shape_cast %16 : vector<1x6x16xf32> to vector<6x16xf32>
    %18 = vector.shape_cast %15 : vector<6x16xf32> to vector<1x6x16xf32>
    tpu.vector_store %arg5[%c0_13, %c0_14, %c0_15], %18 {strides = array<i32>} : memref<1x6x16xf32, #tpu.memory_space<vmem>>, vector<1x6x16xf32>,
    return
  }
  func.func @transform_0(%arg0: i32, %arg1: i32) -> (i32, i32, i32) {
    %c0_i32 = arith.constant 0 : i32
    %c0_i32_0 = arith.constant 0 : i32
    return %arg0, %c0_i32, %arg1 : i32, i32, i32
  }
  func.func @transform_1(%arg0: i32, %arg1: i32) -> (i32, i32) {
    %c0_i32 = arith.constant 0 : i32
    %c0_i32_0 = arith.constant 0 : i32
    %c0_i32_1 = arith.constant 0 : i32
    return %c0_i32, %c0_i32_0 : i32, i32
  }
  func.func @transform_2(%arg0: i32, %arg1: i32) -> (i32, i32) {
    %c0_i32 = arith.constant 0 : i32
    %c0_i32_0 = arith.constant 0 : i32
    %c0_i32_1 = arith.constant 0 : i32
    return %c0_i32, %c0_i32_0 : i32, i32
  }
  func.func @transform_3(%arg0: i32, %arg1: i32) -> (i32, i32, i32) {
    %c0_i32 = arith.constant 0 : i32
    %c0_i32_0 = arith.constant 0 : i32
    return %arg0, %c0_i32, %arg1 : i32, i32, i32
  }
}

</mosaic_0001>

<llo_original>
// kernel: tpu_custom_call.1
$region0: #{tpu_custom_call.1}
  #allocation0 [shape = 'u32[]', space=smem, size = 0x4, offset = 0x4, fixed_abs, tag = 'smem constant byte address 0x4 - core index']
  #allocation1 [shape = 'u32[72,128]{1,0:T(1,128)}', space=vmem, size = 0x9000, scoped, tag = 'internal scratch']
  %s0 = inlined_call_operand.vmem [shape: f32[2,4,16], index: 0, kind: input, shape index: {}]
  %s1 = inlined_call_operand.hbm [shape: f32[6,12], index: 1, kind: input, shape index: {}]
  %s2 = inlined_call_operand.vmem [shape: f32[6,1], index: 2, kind: input, shape index: {}]
  %s3 = inlined_call_operand.vmem [shape: f32[2,6,16], index: 3, kind: output, shape index: {}]
  %s4 = sld [smem:[#allocation0]]
  $region49: #{tpu_custom_call.1} parent=0
    _
  %s6 = ssub.s32 1, %s4
  %s7 = scalar_select 0, %s6, %s4
  $region1: #{tpu_custom_call.1} parent=0
    #allocation2 [shape = 'u8[4096]{0}', space=vmem, size = 0x1000, scoped, tag = 'input window, operand 1, single buffered']
    #allocation3 [shape = 's32[2]{0}', space=sflag, size = 0x8, scoped, tag = 'scoped memory for tpu_custom_call.1']
    %8 = vsyncpa [#allocation3], 0
    loop: start=0, step=1, limit=4
    $region2: #{tpu_custom_call.1} parent=1 // loop_pre_header
      _
    $region3: #{tpu_custom_call.1} parent=1 // loop_header
      %s10 = sphi 0, %s14
      %p11 = scmp.ge.s32.totalorder %s10, 4
      %s17 = sphi 0, %s29
      %s18 = sphi 0, %s25
      %s19 = sphi 0, %s17
      %s20 = sphi 0, %s18
      %s21 = sphi 0, %s19
      %s22 = sphi 0, %s20
      %s34 = sphi 0, %s36
      %s37 = sphi 0, %s34
      %s38 = sphi 0, %s37
      %s54 = sphi 0, %s38
      %s58 = sphi 0, %s58
      %s60 = sphi 0, %s58
      %s61 = sphi 0, %s60
      %s75 = sphi 0, %s61
      %s79 = sphi 0, %s79
      %s81 = sphi 0, %s79
      %s82 = sphi 0, %s81
      %s96 = sphi 0, %s82
      %s104 = sphi 0, %s106
      %s107 = sphi 0, %s104
      %s108 = sphi 0, %s107
      %s124 = sphi 0, %s108
    $region4: #{tpu_custom_call.1} parent=1 // loop_header_branch
      %13 = sbr.rel (%p11) target = $region8
    $region5: #{tpu_custom_call.1} parent=1 // loop_body
      %s15 = ssub.s32 %s10, 1
      %s16 = ssub.s32 %s10, 2
      %s23 = sadd.s32 1, %s18
      %p24 = scmp.ge.s32.totalorder %s23, 1
      %s25 = scalar_select %p24, 0, %s23
      %s26 = sadd.s32 1, %s17
      %s27 = scalar_select %p24, %s26, %s17
      %p28 = scmp.ge.s32.totalorder %s27, 2
      %s29 = scalar_select %p28, 0, %s27
      %s30 = ssub.s32 %s17, %s29
      %s31 = ssub.s32 %s18, %s25
      %s32 = sor.u32 %s30, %s31
      %p33 = scmp.eq.s32.totalorder %s32, 0
      %s35 = sadd.s32 %s34, 1
      %s36 = scalar_select %p33, %s34, %s35
      %p39 = pneg %p33
      %p40 = scmp.eq.s32.totalorder %s10, 1
      %p41 = por %p39, %p40
      %p42 = scmp.ne.s32.totalorder %s34, %s37
      %p43 = scmp.eq.s32.totalorder %s10, 0
      %p44 = por %p42, %p43
      %p45 = scmp.ne.s32.totalorder %s34, %s37
      %p46 = scmp.eq.s32.totalorder %s15, 1
      %p47 = por %p45, %p46
      %p48 = scmp.ne.s32.totalorder %s37, %s38
      %p49 = scmp.eq.s32.totalorder %s15, 0
      %p50 = por %p48, %p49
      %p51 = scmp.ne.s32.totalorder %s37, %s38
      %p52 = scmp.eq.s32.totalorder %s16, 1
      %p53 = por %p51, %p52
      %p55 = scmp.ne.s32.totalorder %s38, %s54
      %p56 = scmp.eq.s32.totalorder %s16, 0
      %p57 = por %p55, %p56
      %s59 = sadd.s32 %s58, 1
      %p62 = scmp.eq.s32.totalorder %s10, 1
      %p63 = scmp.ne.s32.totalorder %s58, %s60
      %p64 = scmp.eq.s32.totalorder %s10, 0
      %p65 = por %p63, %p64
      %p66 = scmp.ne.s32.totalorder %s58, %s60
      %p67 = scmp.eq.s32.totalorder %s15, 1
      %p68 = por %p66, %p67
      %p69 = scmp.ne.s32.totalorder %s60, %s61
      %p70 = scmp.eq.s32.totalorder %s15, 0
      %p71 = por %p69, %p70
      %p72 = scmp.ne.s32.totalorder %s60, %s61
      %p73 = scmp.eq.s32.totalorder %s16, 1
      %p74 = por %p72, %p73
      %p76 = scmp.ne.s32.totalorder %s61, %s75
      %p77 = scmp.eq.s32.totalorder %s16, 0
      %p78 = por %p76, %p77
      %s80 = sadd.s32 %s79, 1
      %p83 = scmp.eq.s32.totalorder %s10, 1
      %p84 = scmp.ne.s32.totalorder %s79, %s81
      %p85 = scmp.eq.s32.totalorder %s10, 0
      %p86 = por %p84, %p85
      %p87 = scmp.ne.s32.totalorder %s79, %s81
      %p88 = scmp.eq.s32.totalorder %s15, 1
      %p89 = por %p87, %p88
      %p90 = scmp.ne.s32.totalorder %s81, %s82
      %p91 = scmp.eq.s32.totalorder %s15, 0
      %p92 = por %p90, %p91
      %p93 = scmp.ne.s32.totalorder %s81, %s82
      %p94 = scmp.eq.s32.totalorder %s16, 1
      %p95 = por %p93, %p94
      %p97 = scmp.ne.s32.totalorder %s82, %s96
      %p98 = scmp.eq.s32.totalorder %s16, 0
      %p99 = por %p97, %p98
      %s100 = ssub.s32 %s17, %s29
      %s101 = ssub.s32 %s18, %s25
      %s102 = sor.u32 %s100, %s101
      %p103 = scmp.eq.s32.totalorder %s102, 0
      %s105 = sadd.s32 %s104, 1
      %s106 = scalar_select %p103, %s104, %s105
      %p109 = pneg %p103
      %p110 = scmp.eq.s32.totalorder %s10, 1
      %p111 = por %p109, %p110
      %p112 = scmp.ne.s32.totalorder %s104, %s107
      %p113 = scmp.eq.s32.totalorder %s10, 0
      %p114 = por %p112, %p113
      %p115 = scmp.ne.s32.totalorder %s104, %s107
      %p116 = scmp.eq.s32.totalorder %s15, 1
      %p117 = por %p115, %p116
      %p118 = scmp.ne.s32.totalorder %s107, %s108
      %p119 = scmp.eq.s32.totalorder %s15, 0
      %p120 = por %p118, %p119
      %p121 = scmp.ne.s32.totalorder %s107, %s108
      %p122 = scmp.eq.s32.totalorder %s16, 1
      %p123 = por %p121, %p122
      %p125 = scmp.ne.s32.totalorder %s108, %s124
      %p126 = scmp.eq.s32.totalorder %s16, 0
      %p127 = por %p125, %p126
      %p128 = scmp.le.s32.totalorder 1, %s10
      %p129 = scmp.lt.s32.totalorder %s10, 3
      %p130 = pnand %p128, %p129
      %p131 = pneg %p130
      // Predicated region
      $region9: #{tpu_custom_call.1} parent=5 // pred_check
        _
      $region10: #{tpu_custom_call.1} parent=5 // pred_check_branch
        %133 = sbr.rel (%p130) target = $region12
      $region11: #{tpu_custom_call.1} parent=5 // pred_region
        %s134 = ssub.s32 %s10, 1
        // Predicated region
        $region13: #{tpu_custom_call.1} parent=11 // pred_check
          %p135 = pneg %p71
        $region14: #{tpu_custom_call.1} parent=11 // pred_check_branch
          %137 = sbr.rel (%p135) target = $region16
        $region15: #{tpu_custom_call.1} parent=11 // pred_region
          %139 = vsyncadd [#allocation3], 0
          %s141 = sshll.u32 %s1, 4
          %s142 = int_to_ptr.hbm [resolvable:$true] %s141
          %s143 = sshll.u32 [#allocation2], 4
          %s144 = int_to_ptr.vmem [resolvable:$true] %s143
          %146 = dma.hbm_to_vmem [thread:$0]  %s142, 128, %s144, [#allocation3]
        $region16: #{tpu_custom_call.1} parent=11 // pred_fallthru
          _
        // Predicated region
        $region17: #{tpu_custom_call.1} parent=11 // pred_check
          %p147 = pneg %p92
        $region18: #{tpu_custom_call.1} parent=11 // pred_check_branch
          %149 = sbr.rel (%p147) target = $region20
        $region19: #{tpu_custom_call.1} parent=11 // pred_region
          _
        $region20: #{tpu_custom_call.1} parent=11 // pred_fallthru
          _
      $region12: #{tpu_custom_call.1} parent=5 // pred_fallthru
        _
      %p150 = scmp.lt.s32.totalorder %s10, 2
      // Predicated region
      $region21: #{tpu_custom_call.1} parent=5 // pred_check
        %p151 = pneg %p150
      $region22: #{tpu_custom_call.1} parent=5 // pred_check_branch
        %153 = sbr.rel (%p151) target = $region24
      $region23: #{tpu_custom_call.1} parent=5 // pred_region
        // Predicated region
        $region25: #{tpu_custom_call.1} parent=23 // pred_check
          %p154 = pneg %p44
        $region26: #{tpu_custom_call.1} parent=23 // pred_check_branch
          %156 = sbr.rel (%p154) target = $region28
        $region27: #{tpu_custom_call.1} parent=23 // pred_region
          %p157 = scmp.lt.s32.totalorder %s17, 1
          %s158 = scalar_select %p157, %s17, 1
          %p159 = scmp.lt.s32.totalorder %s18, 0
          %s160 = scalar_select %p159, %s18, 0
          %s161 = sadd.s32 %s160, %s158
          %s162 = smul.addr %s161, 4
          %s163 = scalar_lea.vmem %s0, %s162
        $region28: #{tpu_custom_call.1} parent=23 // pred_fallthru
          _
      $region24: #{tpu_custom_call.1} parent=5 // pred_fallthru
        _
      %p164 = scmp.le.s32.totalorder 1, %s10
      %p165 = scmp.lt.s32.totalorder %s10, 3
      %p166 = pnand %p164, %p165
      %p167 = pneg %p166
      // Predicated region
      $region29: #{tpu_custom_call.1} parent=5 // pred_check
        _
      $region30: #{tpu_custom_call.1} parent=5 // pred_check_branch
        %169 = sbr.rel (%p166) target = $region32
      $region31: #{tpu_custom_call.1} parent=5 // pred_region
        %s170 = ssub.s32 %s10, 1
        // Predicated region
        $region33: #{tpu_custom_call.1} parent=31 // pred_check
          %p171 = pneg %p71
        $region34: #{tpu_custom_call.1} parent=31 // pred_check_branch
          %173 = sbr.rel (%p171) target = $region36
        $region35: #{tpu_custom_call.1} parent=31 // pred_region
          %175 = dma.done [#allocation3], 128
        $region36: #{tpu_custom_call.1} parent=31 // pred_fallthru
          _
        %p176 = scmp.lt.s32.totalorder %s19, 1
        %s177 = scalar_select %p176, %s19, 1
        %p178 = scmp.lt.s32.totalorder %s20, 0
        %s179 = scalar_select %p178, %s20, 0
        %s180 = sadd.s32 %s179, %s177
        %s181 = smul.addr %s180, 4
        %s182 = scalar_lea.vmem %s0, %s181
        %p183 = pneg %p50
        %p184 = pneg %p47
        %p185 = pneg %p71
        %p186 = pneg %p68
        %p187 = pneg %p92
        %p188 = pneg %p89
        %p189 = pneg %p120
        %p190 = pneg %p117
        %p191 = scmp.lt.s32.totalorder %s19, 1
        %s192 = scalar_select %p191, %s19, 1
        %p193 = scmp.lt.s32.totalorder %s20, 0
        %s194 = scalar_select %p193, %s20, 0
        %s195 = sadd.s32 %s194, %s192
        %s196 = smul.addr %s195, 8
        %s197 = scalar_lea.vmem %s3, %s196
        %p198 = scmp.lt.s32.totalorder %s19, 1
        %s199 = scalar_select %p198, %s19, 1
        %p200 = scmp.lt.s32.totalorder %s20, 0
        %s201 = scalar_select %p200, %s20, 0
        %s202 = sadd.s32 %s201, %s199
        %s203 = smul.addr %s202, 4
        %s204 = scalar_lea.vmem %s0, %s203
        %p205 = scmp.lt.s32.totalorder %s19, 1
        %s206 = scalar_select %p205, %s19, 1
        %p207 = scmp.lt.s32.totalorder %s20, 0
        %s208 = scalar_select %p207, %s20, 0
        %s209 = sadd.s32 %s208, %s206
        %s210 = smul.addr %s209, 8
        %s211 = scalar_lea.vmem %s3, %s210
        %v212 = vld [vmem:[%s204] sm:$0xf]
        %214 = vrot.lane.b32.xlu0 %v212, 4
        %v215 = vpop.permute.xlu0 %214
        %vm217 = vcmask 31744
        %v218 = vsel %vm217, 0.0, %v215
        %219 = vrot.lane.b32.xlu0 %v212, 2
        %v220 = vpop.permute.xlu0 %219
        %vm222 = vcmask 15360
        %v223 = vsel %vm222, 0.0, %v220
        %v225 = vrot.slane %v223, 4
        %vm227 = vcmask 1043456
        %v228 = vsel %vm227, %v218, %v225
        %v229 = vld [vmem:[#allocation2] sm:$0x3f]
        %v230 = vld [vmem:[%s2] sm:$0x3f]
        %232 = vset.pattern.permute.xlu0 0
        %233 = vperm.xlu0 %232, %v230
        %v234 = vpop.permute.xlu0 %233
        %vm236 = vcmask 97280
        %v238 = vsel %vm236, %v229, 0
        %v240 = vsel %vm227, %v212, 0
        %242 = vmatpush.msra.mxu0 0.0
        %243 = vmatpush.msra.mxu0 0.0
        %244 = vmatpush.msra.mxu0 0.0
        %245 = vmatpush.msra.mxu0 0.0
        %246 = vmatpush.msra.mxu0 0.0
        %247 = vmatpush.msra.mxu0 0.0
        %248 = vmatpush.msra.mxu0 0.0
        %249 = vmatpush.msra.mxu0 0.0
        %250 = vmatpush.msra.mxu0 0.0
        %251 = vmatpush.msra.mxu0 0.0
        %252 = vmatpush.msra.mxu0 0.0
        %253 = vmatpush.msra.mxu0 0.0
        %254 = vmatpush.msra.mxu0 0.0
        %255 = vmatpush.msra.mxu0 0.0
        %v256 = vand.u32 %v240, 4294901760
        %257 = vmatpush.msra.mxu0 %v256
        %v258 = vand.u32 %v228, 4294901760
        %259 = vmatpush.msra.mxu0 %v258
        %v260 = vand.u32 %v238, 4294901760
        %v261 = vsub.f32 %v238, %v260
        %v262 = vand.u32 %v261, 4294901760
        %v263 = vsub.f32 %v261, %v262
        %v264 = vand.u32 %v263, 4294901760
        %265 = vmatmul.f32.gmra.mxu0 %v264
        %v266 = vpop.f32.mrf.mxu0
        %v267 = vadd.f32 %v234, %v266
        %268 = vdwg.mxu0
        %269 = vmatpush.msra.mxu0 0.0
        %270 = vmatpush.msra.mxu0 0.0
        %271 = vmatpush.msra.mxu0 0.0
        %272 = vmatpush.msra.mxu0 0.0
        %273 = vmatpush.msra.mxu0 0.0
        %274 = vmatpush.msra.mxu0 0.0
        %275 = vmatpush.msra.mxu0 0.0
        %276 = vmatpush.msra.mxu0 0.0
        %277 = vmatpush.msra.mxu0 0.0
        %278 = vmatpush.msra.mxu0 0.0
        %279 = vmatpush.msra.mxu0 0.0
        %280 = vmatpush.msra.mxu0 0.0
        %281 = vmatpush.msra.mxu0 0.0
        %282 = vmatpush.msra.mxu0 0.0
        %v283 = vand.u32 %v240, 4294901760
        %v284 = vsub.f32 %v240, %v283
        %v285 = vand.u32 %v284, 4294901760
        %v286 = vsub.f32 %v284, %v285
        %v287 = vand.u32 %v286, 4294901760
        %288 = vmatpush.msra.mxu0 %v287
        %v289 = vand.u32 %v228, 4294901760
        %v290 = vsub.f32 %v228, %v289
        %v291 = vand.u32 %v290, 4294901760
        %v292 = vsub.f32 %v290, %v291
        %v293 = vand.u32 %v292, 4294901760
        %294 = vmatpush.msra.mxu0 %v293
        %v295 = vand.u32 %v238, 4294901760
        %296 = vmatmul.f32.gmra.mxu0 %v295
        %v297 = vpop.f32.mrf.mxu0
        %v298 = vadd.f32 %v267, %v297
        %299 = vdwg.mxu0
        %300 = vmatpush.msra.mxu0 0.0
        %301 = vmatpush.msra.mxu0 0.0
        %302 = vmatpush.msra.mxu0 0.0
        %303 = vmatpush.msra.mxu0 0.0
        %304 = vmatpush.msra.mxu0 0.0
        %305 = vmatpush.msra.mxu0 0.0
        %306 = vmatpush.msra.mxu0 0.0
        %307 = vmatpush.msra.mxu0 0.0
        %308 = vmatpush.msra.mxu0 0.0
        %309 = vmatpush.msra.mxu0 0.0
        %310 = vmatpush.msra.mxu0 0.0
        %311 = vmatpush.msra.mxu0 0.0
        %312 = vmatpush.msra.mxu0 0.0
        %313 = vmatpush.msra.mxu0 0.0
        %v314 = vand.u32 %v240, 4294901760
        %v315 = vsub.f32 %v240, %v314
        %316 = vmatpush.msra.mxu0 %v315
        %v317 = vand.u32 %v228, 4294901760
        %v318 = vsub.f32 %v228, %v317
        %319 = vmatpush.msra.mxu0 %v318
        %v320 = vand.u32 %v238, 4294901760
        %v321 = vsub.f32 %v238, %v320
        %322 = vmatmul.f32.gmra.mxu0 %v321
        %v323 = vpop.f32.mrf.mxu0
        %v324 = vadd.f32 %v298, %v323
        %325 = vdwg.mxu0
        %326 = vmatpush.msra.mxu0 0.0
        %327 = vmatpush.msra.mxu0 0.0
        %328 = vmatpush.msra.mxu0 0.0
        %329 = vmatpush.msra.mxu0 0.0
        %330 = vmatpush.msra.mxu0 0.0
        %331 = vmatpush.msra.mxu0 0.0
        %332 = vmatpush.msra.mxu0 0.0
        %333 = vmatpush.msra.mxu0 0.0
        %334 = vmatpush.msra.mxu0 0.0
        %335 = vmatpush.msra.mxu0 0.0
        %336 = vmatpush.msra.mxu0 0.0
        %337 = vmatpush.msra.mxu0 0.0
        %338 = vmatpush.msra.mxu0 0.0
        %339 = vmatpush.msra.mxu0 0.0
        %v340 = vand.u32 %v240, 4294901760
        %341 = vmatpush.msra.mxu0 %v340
        %v342 = vand.u32 %v228, 4294901760
        %343 = vmatpush.msra.mxu0 %v342
        %v344 = vand.u32 %v238, 4294901760
        %v345 = vsub.f32 %v238, %v344
        %v346 = vand.u32 %v345, 4294901760
        %347 = vmatmul.f32.gmra.mxu0 %v346
        %v348 = vpop.f32.mrf.mxu0
        %v349 = vadd.f32 %v324, %v348
        %350 = vdwg.mxu0
        %351 = vmatpush.msra.mxu0 0.0
        %352 = vmatpush.msra.mxu0 0.0
        %353 = vmatpush.msra.mxu0 0.0
        %354 = vmatpush.msra.mxu0 0.0
        %355 = vmatpush.msra.mxu0 0.0
        %356 = vmatpush.msra.mxu0 0.0
        %357 = vmatpush.msra.mxu0 0.0
        %358 = vmatpush.msra.mxu0 0.0
        %359 = vmatpush.msra.mxu0 0.0
        %360 = vmatpush.msra.mxu0 0.0
        %361 = vmatpush.msra.mxu0 0.0
        %362 = vmatpush.msra.mxu0 0.0
        %363 = vmatpush.msra.mxu0 0.0
        %364 = vmatpush.msra.mxu0 0.0
        %v365 = vand.u32 %v240, 4294901760
        %v366 = vsub.f32 %v240, %v365
        %v367 = vand.u32 %v366, 4294901760
        %368 = vmatpush.msra.mxu0 %v367
        %v369 = vand.u32 %v228, 4294901760
        %v370 = vsub.f32 %v228, %v369
        %v371 = vand.u32 %v370, 4294901760
        %372 = vmatpush.msra.mxu0 %v371
        %v373 = vand.u32 %v238, 4294901760
        %374 = vmatmul.f32.gmra.mxu0 %v373
        %v375 = vpop.f32.mrf.mxu0
        %v376 = vadd.f32 %v349, %v375
        %377 = vdwg.mxu0
        %378 = vmatpush.msra.mxu0 0.0
        %379 = vmatpush.msra.mxu0 0.0
        %380 = vmatpush.msra.mxu0 0.0
        %381 = vmatpush.msra.mxu0 0.0
        %382 = vmatpush.msra.mxu0 0.0
        %383 = vmatpush.msra.mxu0 0.0
        %384 = vmatpush.msra.mxu0 0.0
        %385 = vmatpush.msra.mxu0 0.0
        %386 = vmatpush.msra.mxu0 0.0
        %387 = vmatpush.msra.mxu0 0.0
        %388 = vmatpush.msra.mxu0 0.0
        %389 = vmatpush.msra.mxu0 0.0
        %390 = vmatpush.msra.mxu0 0.0
        %391 = vmatpush.msra.mxu0 0.0
        %v392 = vand.u32 %v240, 4294901760
        %393 = vmatpush.msra.mxu0 %v392
        %v394 = vand.u32 %v228, 4294901760
        %395 = vmatpush.msra.mxu0 %v394
        %v396 = vand.u32 %v238, 4294901760
        %397 = vmatmul.f32.gmra.mxu0 %v396
        %v398 = vpop.f32.mrf.mxu0
        %v399 = vadd.f32 %v376, %v398
        %400 = vdwg.mxu0
        %vm401 = vcmask 128000
        %402 = vst.msk [vmem:[%s211] sm:$0x3f] %vm401, %v399
        %p403 = scmp.lt.s32.totalorder %s19, 1
        %s404 = scalar_select %p403, %s19, 1
        %p405 = scmp.lt.s32.totalorder %s20, 0
        %s406 = scalar_select %p405, %s20, 0
        %s407 = sadd.s32 %s406, %s404
        %s408 = smul.addr %s407, 8
        %s409 = scalar_lea.vmem %s3, %s408
        // Predicated region
        $region37: #{tpu_custom_call.1} parent=31 // pred_check
          %p410 = pneg %p117
        $region38: #{tpu_custom_call.1} parent=31 // pred_check_branch
          %412 = sbr.rel (%p410) target = $region40
        $region39: #{tpu_custom_call.1} parent=31 // pred_region
          _
        $region40: #{tpu_custom_call.1} parent=31 // pred_fallthru
          _
      $region32: #{tpu_custom_call.1} parent=5 // pred_fallthru
        _
      %p413 = scmp.le.s32.totalorder 2, %s10
      // Predicated region
      $region41: #{tpu_custom_call.1} parent=5 // pred_check
        %p414 = pneg %p413
      $region42: #{tpu_custom_call.1} parent=5 // pred_check_branch
        %416 = sbr.rel (%p414) target = $region44
      $region43: #{tpu_custom_call.1} parent=5 // pred_region
        %s417 = ssub.s32 %s10, 2
        // Predicated region
        $region45: #{tpu_custom_call.1} parent=43 // pred_check
          %p418 = pneg %p123
        $region46: #{tpu_custom_call.1} parent=43 // pred_check_branch
          %420 = sbr.rel (%p418) target = $region48
        $region47: #{tpu_custom_call.1} parent=43 // pred_region
          %p421 = scmp.lt.s32.totalorder %s21, 1
          %s422 = scalar_select %p421, %s21, 1
          %p423 = scmp.lt.s32.totalorder %s22, 0
          %s424 = scalar_select %p423, %s22, 0
          %s425 = sadd.s32 %s424, %s422
          %s426 = smul.addr %s425, 8
          %s427 = scalar_lea.vmem %s3, %s426
        $region48: #{tpu_custom_call.1} parent=43 // pred_fallthru
          _
      $region44: #{tpu_custom_call.1} parent=5 // pred_fallthru
        _
    $region6: #{tpu_custom_call.1} parent=1 // loop_footer
      %s14 = sadd.s32 1, %s10
    $region7: #{tpu_custom_call.1} parent=1 // loop_footer_branch
      %9 = sbr.rel target = $region3
    $region8: #{tpu_custom_call.1} parent=1 // loop_exit
      _
    %428 = vsyncpa [#allocation3], 1
    %s429 = scalar_lea.sflag [#allocation3], 1
    %430 = vsyncpa %s429, 1

</llo_original>
